<compile_context>
chip_gen: v7x
topology: tpu7x:2x2x1
jax: 0.10.0
libtpu: 0.0.40
codegen_flags: <defaults>
</compile_context>

<pallas_src>
import functools
import math

import jax
import jax.numpy as jnp
from jax.experimental import pallas as pl
from jax.experimental.pallas import tpu as pltpu


# ------------------------------------------------------------------ kernel ---
def gumbel_autoencoder_kernel(
    z_dim,                                   # static (functools.partial)
    # inputs
    tau_ref,                                 # SMEM (1,)  Gumbel-softmax temperature
    x_ref, u_ref,                            # (B,x_dim), (B,S*z) uniform noise
    we_ref, be_ref,                          # encoder Linear  (x_dim,h), (1,h)
    ws_ref, bs_ref,                          # logits  Linear  (h, S*z), (1,S*z)
    gsum_ref,                                # (S*z, S*z) 0/1 same-group indicator
    wd1_ref, bd1_ref,                        # block-diag dec L1 (S*z, S*h), (1,S*h)
    wd2_ref, bd2_ref,                        # block-diag dec L2 (S*h, S*x), (1,S*x)
    # outputs
    xmu_ref, qz_ref, kl_ref,
):
    f32 = jnp.float32
    inv_tau = 1.0 / tau_ref[0]

    # ---- encoder: Perceptron([x_dim, h_dim]) = Linear + ReLU ----------------
    x = x_ref[...]
    h = jnp.dot(x, we_ref[...], preferred_element_type=f32) + be_ref[...]
    h = jnp.maximum(h, 0.0)

    # ---- GumbelSoftmax sampler: logits over n_samples x z_dim categories ----
    logits = jnp.dot(h, ws_ref[...], preferred_element_type=f32) + bs_ref[...]

    gsum = gsum_ref[...]

    # q(z|x): softmax over each z_dim-sized lane group, kept lane-dense.
    # Row-max shift is constant within every group -> exact; group sums via MXU.
    m1 = jnp.max(logits, axis=-1, keepdims=True)
    e1 = jnp.exp(logits - m1)
    qz = e1 / jnp.dot(e1, gsum, preferred_element_type=f32)          # (B, S*z)

    # Reparametrized sample: softmax((logits + Gumbel)/tau) per group.
    g = -jnp.log(-jnp.log(u_ref[...] + 1e-8) + 1e-8)
    pert = (logits + g) * inv_tau
    m2 = jnp.max(pert, axis=-1, keepdims=True)
    e2 = jnp.exp(pert - m2)
    sample = e2 / jnp.dot(e2, gsum, preferred_element_type=f32)      # (B, S*z)

    # ---- decoder: Perceptron([z, h, x], sigmoid output) ---------------------
    # Block-diagonal fused weights apply the shared decoder to all n_samples
    # Gumbel samples simultaneously while staying 128+ lanes wide.
    d1 = jnp.dot(sample, wd1_ref[...], preferred_element_type=f32) + bd1_ref[...]
    d1 = jnp.maximum(d1, 0.0)
    d2 = jnp.dot(d1, wd2_ref[...], preferred_element_type=f32) + bd2_ref[...]
    x_mu = 1.0 / (1.0 + jnp.exp(-d2))                                # (B, S*x)

    # ---- KL(q || Uniform(z_dim)), summed over samples & categories ----------
    kl = jnp.sum(qz * (jnp.log(qz + 1e-8) + math.log(float(z_dim))),
                 axis=-1, keepdims=True)                             # (B, 1)

    xmu_ref[...] = x_mu
    qz_ref[...] = qz
    kl_ref[...] = kl


# ----------------------------------------------------------------- wrapper ---
def gumbel_autoencoder_forward(x, u, params, tau, *, n_samples, z_dim):
    B, x_dim = x.shape
    h_dim = params["we"].shape[1]
    SZ = n_samples * z_dim
    assert u.shape == (B, SZ)

    f32 = jnp.float32
    eye = jnp.eye(n_samples, dtype=f32)

    # 0/1 same-group indicator: (e @ gsum)[i, m] = sum of e over m's z_dim group.
    grp = jnp.arange(SZ) // z_dim
    gsum = (grp[:, None] == grp[None, :]).astype(f32)                # (S*z, S*z)

    # Block-diagonal fused decoder weights / tiled biases (wrapper-side layout).
    wd1b = jnp.kron(eye, params["wd1"])                              # (S*z, S*h)
    bd1b = jnp.tile(params["bd1"], (1, n_samples))                   # (1, S*h)
    wd2b = jnp.kron(eye, params["wd2"])                              # (S*h, S*x)
    bd2b = jnp.tile(params["bd2"], (1, n_samples))                   # (1, S*x)

    vmem = pl.BlockSpec(memory_space=pltpu.MemorySpace.VMEM)
    smem = pl.BlockSpec(memory_space=pltpu.MemorySpace.SMEM)

    args = (
        jnp.full((1,), tau, f32),
        x, u,
        params["we"], params["be"],
        params["ws"], params["bs"],
        gsum, wd1b, bd1b, wd2b, bd2b,
    )

    out_shape = (
        jax.ShapeDtypeStruct((B, n_samples * x_dim), f32),   # x_mu slab
        jax.ShapeDtypeStruct((B, SZ), f32),                  # q(z) slab
        jax.ShapeDtypeStruct((B, 1), f32),                   # KL per batch row
    )

    xmu_slab, qz_slab, kl = pl.pallas_call(
        functools.partial(gumbel_autoencoder_kernel, z_dim),
        out_shape=out_shape,
        in_specs=[smem] + [vmem] * (len(args) - 1),
        out_specs=(vmem, vmem, vmem),
    )(*args)

    x_mu = xmu_slab.reshape(B * n_samples, x_dim)
    qz = qz_slab.reshape(B * n_samples, z_dim)
    return x_mu, qz, kl[:, 0]


# -------------------------------------------------------------- pure-JAX ref -
def gumbel_autoencoder_ref(x, u, params, tau, *, n_samples, z_dim):
    B = x.shape[0]
    h = jnp.maximum(x @ params["we"] + params["be"], 0.0)
    logits = (h @ params["ws"] + params["bs"]).reshape(B * n_samples, z_dim)
    qz = jax.nn.softmax(logits, axis=-1)
    g = -jnp.log(-jnp.log(u.reshape(B * n_samples, z_dim) + 1e-8) + 1e-8)
    sample = jax.nn.softmax((logits + g) / tau, axis=-1)
    d1 = jnp.maximum(sample @ params["wd1"] + params["bd1"], 0.0)
    x_mu = jax.nn.sigmoid(d1 @ params["wd2"] + params["bd2"])
    kl_elem = qz * (jnp.log(qz + 1e-8) - jnp.log(1.0 / z_dim))
    kl = jnp.sum(kl_elem.reshape(B, n_samples, z_dim), axis=(1, 2))
    return x_mu, qz, kl


# -------------------------------------------------------------------- setup --
def init_params(key, x_dim, h_dim, z_dim, n_samples):
    """Xavier-normal weights (as the PyTorch __init__), zero biases.
    Weights stored transposed as [in, out] so the kernel does x @ W + b."""
    def xavier(k, fan_in, fan_out):
        std = math.sqrt(2.0 / (fan_in + fan_out))
        return jax.random.normal(k, (fan_in, fan_out), jnp.float32) * std

    ks = jax.random.split(key, 4)
    return dict(
        we=xavier(ks[0], x_dim, h_dim),
        be=jnp.zeros((1, h_dim), jnp.float32),
        ws=xavier(ks[1], h_dim, n_samples * z_dim),
        bs=jnp.zeros((1, n_samples * z_dim), jnp.float32),
        wd1=xavier(ks[2], z_dim, h_dim),
        bd1=jnp.zeros((1, h_dim), jnp.float32),
        wd2=xavier(ks[3], h_dim, x_dim),
        bd2=jnp.zeros((1, x_dim), jnp.float32),
    )


if __name__ == "__main__":
    # GumbelAutoencoder(dims=[x_dim, z_dim, [h_dim]], n_samples=8), batch = 8
    X_DIM, Z_DIM, H_DIM, N_SAMPLES = 32, 16, 64, 8
    B = 8
    TAU = 0.5

    key = jax.random.PRNGKey(0)
    k_x, k_u, k_p = jax.random.split(key, 3)

    x = jax.random.uniform(k_x, (B, X_DIM), jnp.float32)                  # pixel-like input
    u = jax.random.uniform(k_u, (B, N_SAMPLES * Z_DIM), jnp.float32)      # torch.rand analogue
    params = init_params(k_p, X_DIM, H_DIM, Z_DIM, N_SAMPLES)

    x_mu, qz, kl = gumbel_autoencoder_forward(
        x, u, params, TAU, n_samples=N_SAMPLES, z_dim=Z_DIM
    )
    jax.block_until_ready((x_mu, qz, kl))

    # sanity check against the pure-JAX reference
    rx_mu, rqz, rkl = gumbel_autoencoder_ref(
        x, u, params, TAU, n_samples=N_SAMPLES, z_dim=Z_DIM
    )
    assert x_mu.shape == (B * N_SAMPLES, X_DIM)
    assert qz.shape == (B * N_SAMPLES, Z_DIM)
    assert kl.shape == (B,)
    for a, b in [(x_mu, rx_mu), (qz, rqz), (kl, rkl)]:
        assert jnp.allclose(a, b, atol=1e-4, rtol=1e-4), "mismatch vs reference"

    print("KERNEL_OK")
</pallas_src>

<mosaic_0001>
module attributes {stable_mosaic.version = 11 : i64} {
  func.func @gumbel_autoencoder_kernel(%arg0: memref<1xf32, #tpu.memory_space<smem>>, %arg1: memref<8x32xf32, #tpu.memory_space<vmem>>, %arg2: memref<8x128xf32, #tpu.memory_space<vmem>>, %arg3: memref<32x64xf32, #tpu.memory_space<vmem>>, %arg4: memref<1x64xf32, #tpu.memory_space<vmem>>, %arg5: memref<64x128xf32, #tpu.memory_space<vmem>>, %arg6: memref<1x128xf32, #tpu.memory_space<vmem>>, %arg7: memref<128x128xf32, #tpu.memory_space<vmem>>, %arg8: memref<128x512xf32, #tpu.memory_space<vmem>>, %arg9: memref<1x512xf32, #tpu.memory_space<vmem>>, %arg10: memref<512x256xf32, #tpu.memory_space<vmem>>, %arg11: memref<1x256xf32, #tpu.memory_space<vmem>>, %arg12: memref<8x256xf32, #tpu.memory_space<vmem>>, %arg13: memref<8x128xf32, #tpu.memory_space<vmem>>, %arg14: memref<8x1xf32, #tpu.memory_space<vmem>>) attributes {dimension_semantics = [], scalar_prefetch = 0 : i64, scratch_operands = 0 : i64, tpu.core_type = #tpu.core_type<tc>} {
    %c0 = arith.constant 0 : index
    %0 = memref.load %arg0[%c0] : memref<1xf32, #tpu.memory_space<smem>>
    %cst = arith.constant 1.000000e+00 : f32
    %1 = arith.divf %cst, %0 : f32
    %c0_0 = arith.constant 0 : index
    %c0_1 = arith.constant 0 : index
    %2 = vector.load %arg1[%c0_0, %c0_1] : memref<8x32xf32, #tpu.memory_space<vmem>>, vector<8x32xf32>
    %c0_2 = arith.constant 0 : index
    %c0_3 = arith.constant 0 : index
    %3 = vector.load %arg3[%c0_2, %c0_3] : memref<32x64xf32, #tpu.memory_space<vmem>>, vector<32x64xf32>
    %cst_4 = arith.constant dense<0.000000e+00> : vector<8x64xf32>
    %4 = tpu.matmul %2, %3, %cst_4 {dimension_numbers = #tpu.dot_dimension_numbers<[1], [0], [0], [1], [0, 0, 1, 1], [], []>} : vector<8x32xf32>, vector<32x64xf32>, vector<8x64xf32> -> vector<8x64xf32>
    %c0_5 = arith.constant 0 : index
    %c0_6 = arith.constant 0 : index
    %5 = vector.load %arg4[%c0_5, %c0_6] : memref<1x64xf32, #tpu.memory_space<vmem>>, vector<1x64xf32>
    %6 = vector.broadcast %5 : vector<1x64xf32> to vector<8x64xf32>
    %7 = arith.addf %4, %6 : vector<8x64xf32>
    %cst_7 = arith.constant 0.000000e+00 : f32
    %8 = vector.broadcast %cst_7 : f32 to vector<8x64xf32>
    %9 = arith.maximumf %7, %8 : vector<8x64xf32>
    %c0_8 = arith.constant 0 : index
    %c0_9 = arith.constant 0 : index
    %10 = vector.load %arg5[%c0_8, %c0_9] : memref<64x128xf32, #tpu.memory_space<vmem>>, vector<64x128xf32>
    %cst_10 = arith.constant dense<0.000000e+00> : vector<8x128xf32>
    %11 = tpu.matmul %9, %10, %cst_10 {dimension_numbers = #tpu.dot_dimension_numbers<[1], [0], [0], [1], [0, 0, 1, 1], [], []>} : vector<8x64xf32>, vector<64x128xf32>, vector<8x128xf32> -> vector<8x128xf32>
    %c0_11 = arith.constant 0 : index
    %c0_12 = arith.constant 0 : index
    %12 = vector.load %arg6[%c0_11, %c0_12] : memref<1x128xf32, #tpu.memory_space<vmem>>, vector<1x128xf32>
    %13 = vector.broadcast %12 : vector<1x128xf32> to vector<8x128xf32>
    %14 = arith.addf %11, %13 : vector<8x128xf32>
    %c0_13 = arith.constant 0 : index
    %c0_14 = arith.constant 0 : index
    %15 = vector.load %arg7[%c0_13, %c0_14] : memref<128x128xf32, #tpu.memory_space<vmem>>, vector<128x128xf32>
    %cst_15 = arith.constant dense<0xFF800000> : vector<8xf32>
    %16 = vector.multi_reduction <maximumf>, %14, %cst_15 [1] : vector<8x128xf32> to vector<8xf32>
    %17 = vector.shape_cast %16 : vector<8xf32> to vector<8x1xf32>
    %18 = vector.broadcast %17 : vector<8x1xf32> to vector<8x128xf32>
    %19 = arith.subf %14, %18 : vector<8x128xf32>
    %20 = math.exp %19 : vector<8x128xf32>
    %cst_16 = arith.constant dense<0.000000e+00> : vector<8x128xf32>
    %21 = tpu.matmul %20, %15, %cst_16 {dimension_numbers = #tpu.dot_dimension_numbers<[1], [0], [0], [1], [0, 0, 1, 1], [], []>} : vector<8x128xf32>, vector<128x128xf32>, vector<8x128xf32> -> vector<8x128xf32>
    %22 = arith.divf %20, %21 : vector<8x128xf32>
    %c0_17 = arith.constant 0 : index
    %c0_18 = arith.constant 0 : index
    %23 = vector.load %arg2[%c0_17, %c0_18] : memref<8x128xf32, #tpu.memory_space<vmem>>, vector<8x128xf32>
    %cst_19 = arith.constant 9.99999993E-9 : f32
    %24 = vector.broadcast %cst_19 : f32 to vector<8x128xf32>
    %25 = arith.addf %23, %24 : vector<8x128xf32>
    %26 = math.log %25 : vector<8x128xf32>
    %cst_20 = arith.constant 0.000000e+00 : f32
    %27 = vector.broadcast %cst_20 : f32 to vector<8x128xf32>
    %28 = arith.subf %27, %26 : vector<8x128xf32>
    %cst_21 = arith.constant 9.99999993E-9 : f32
    %29 = vector.broadcast %cst_21 : f32 to vector<8x128xf32>
    %30 = arith.addf %28, %29 : vector<8x128xf32>
    %31 = math.log %30 : vector<8x128xf32>
    %cst_22 = arith.constant 0.000000e+00 : f32
    %32 = vector.broadcast %cst_22 : f32 to vector<8x128xf32>
    %33 = arith.subf %32, %31 : vector<8x128xf32>
    %34 = arith.addf %14, %33 : vector<8x128xf32>
    %35 = vector.broadcast %1 : f32 to vector<8x128xf32>
    %36 = arith.mulf %34, %35 : vector<8x128xf32>
    %cst_23 = arith.constant dense<0xFF800000> : vector<8xf32>
    %37 = vector.multi_reduction <maximumf>, %36, %cst_23 [1] : vector<8x128xf32> to vector<8xf32>
    %38 = vector.shape_cast %37 : vector<8xf32> to vector<8x1xf32>
    %39 = vector.broadcast %38 : vector<8x1xf32> to vector<8x128xf32>
    %40 = arith.subf %36, %39 : vector<8x128xf32>
    %41 = math.exp %40 : vector<8x128xf32>
    %cst_24 = arith.constant dense<0.000000e+00> : vector<8x128xf32>
    %42 = tpu.matmul %41, %15, %cst_24 {dimension_numbers = #tpu.dot_dimension_numbers<[1], [0], [0], [1], [0, 0, 1, 1], [], []>} : vector<8x128xf32>, vector<128x128xf32>, vector<8x128xf32> -> vector<8x128xf32>
    %43 = arith.divf %41, %42 : vector<8x128xf32>
    %c0_25 = arith.constant 0 : index
    %c0_26 = arith.constant 0 : index
    %44 = vector.load %arg8[%c0_25, %c0_26] : memref<128x512xf32, #tpu.memory_space<vmem>>, vector<128x512xf32>
    %cst_27 = arith.constant dense<0.000000e+00> : vector<8x512xf32>
    %45 = tpu.matmul %43, %44, %cst_27 {dimension_numbers = #tpu.dot_dimension_numbers<[1], [0], [0], [1], [0, 0, 1, 1], [], []>} : vector<8x128xf32>, vector<128x512xf32>, vector<8x512xf32> -> vector<8x512xf32>
    %c0_28 = arith.constant 0 : index
    %c0_29 = arith.constant 0 : index
    %46 = vector.load %arg9[%c0_28, %c0_29] : memref<1x512xf32, #tpu.memory_space<vmem>>, vector<1x512xf32>
    %47 = vector.broadcast %46 : vector<1x512xf32> to vector<8x512xf32>
    %48 = arith.addf %45, %47 : vector<8x512xf32>
    %cst_30 = arith.constant 0.000000e+00 : f32
    %49 = vector.broadcast %cst_30 : f32 to vector<8x512xf32>
    %50 = arith.maximumf %48, %49 : vector<8x512xf32>
    %c0_31 = arith.constant 0 : index
    %c0_32 = arith.constant 0 : index
    %51 = vector.load %arg10[%c0_31, %c0_32] : memref<512x256xf32, #tpu.memory_space<vmem>>, vector<512x256xf32>
    %cst_33 = arith.constant dense<0.000000e+00> : vector<8x256xf32>
    %52 = tpu.matmul %50, %51, %cst_33 {dimension_numbers = #tpu.dot_dimension_numbers<[1], [0], [0], [1], [0, 0, 1, 1], [], []>} : vector<8x512xf32>, vector<512x256xf32>, vector<8x256xf32> -> vector<8x256xf32>
    %c0_34 = arith.constant 0 : index
    %c0_35 = arith.constant 0 : index
    %53 = vector.load %arg11[%c0_34, %c0_35] : memref<1x256xf32, #tpu.memory_space<vmem>>, vector<1x256xf32>
    %54 = vector.broadcast %53 : vector<1x256xf32> to vector<8x256xf32>
    %55 = arith.addf %52, %54 : vector<8x256xf32>
    %cst_36 = arith.constant 0.000000e+00 : f32
    %56 = vector.broadcast %cst_36 : f32 to vector<8x256xf32>
    %57 = arith.subf %56, %55 : vector<8x256xf32>
    %58 = math.exp %57 : vector<8x256xf32>
    %cst_37 = arith.constant 1.000000e+00 : f32
    %59 = vector.broadcast %cst_37 : f32 to vector<8x256xf32>
    %60 = arith.addf %59, %58 : vector<8x256xf32>
    %cst_38 = arith.constant 1.000000e+00 : f32
    %61 = vector.broadcast %cst_38 : f32 to vector<8x256xf32>
    %62 = arith.divf %61, %60 : vector<8x256xf32>
    %cst_39 = arith.constant 9.99999993E-9 : f32
    %63 = vector.broadcast %cst_39 : f32 to vector<8x128xf32>
    %64 = arith.addf %22, %63 : vector<8x128xf32>
    %65 = math.log %64 : vector<8x128xf32>
    %cst_40 = arith.constant 2.77258873 : f32
    %66 = vector.broadcast %cst_40 : f32 to vector<8x128xf32>
    %67 = arith.addf %65, %66 : vector<8x128xf32>
    %68 = arith.mulf %22, %67 : vector<8x128xf32>
    %cst_41 = arith.constant dense<0.000000e+00> : vector<8xf32>
    %69 = vector.multi_reduction <add>, %68, %cst_41 [1] : vector<8x128xf32> to vector<8xf32>
    %70 = vector.shape_cast %69 : vector<8xf32> to vector<8x1xf32>
    %c0_42 = arith.constant 0 : index
    %c0_43 = arith.constant 0 : index
    %71 = vector.load %arg12[%c0_42, %c0_43] : memref<8x256xf32, #tpu.memory_space<vmem>>, vector<8x256xf32>
    tpu.vector_store %arg12[%c0_42, %c0_43], %62 {strides = array<i32>} : memref<8x256xf32, #tpu.memory_space<vmem>>, vector<8x256xf32>,
    %c0_44 = arith.constant 0 : index
    %c0_45 = arith.constant 0 : index
    %72 = vector.load %arg13[%c0_44, %c0_45] : memref<8x128xf32, #tpu.memory_space<vmem>>, vector<8x128xf32>
    tpu.vector_store %arg13[%c0_44, %c0_45], %22 {strides = array<i32>} : memref<8x128xf32, #tpu.memory_space<vmem>>, vector<8x128xf32>,
    %c0_46 = arith.constant 0 : index
    %c0_47 = arith.constant 0 : index
    %73 = vector.load %arg14[%c0_46, %c0_47] : memref<8x1xf32, #tpu.memory_space<vmem>>, vector<8x1xf32>
    tpu.vector_store %arg14[%c0_46, %c0_47], %70 {strides = array<i32>} : memref<8x1xf32, #tpu.memory_space<vmem>>, vector<8x1xf32>,
    return
  }
}

</mosaic_0001>

<llo_original>
// kernel: tpu_custom_call.1
$region0: #{tpu_custom_call.1}
  #allocation0 [shape = 'u32[]', space=smem, size = 0x4, offset = 0x4, fixed_abs, tag = 'smem constant byte address 0x4 - core index']
  #allocation1 [shape = 'u32[144,128]{1,0:T(1,128)}', space=vmem, size = 0x12000, scoped, tag = 'internal scratch']
  #allocation2 [shape = 'f32[1]{0:T(128)S(6)}', space=smem, size = 0x200, scoped, tag = 'scoped memory for tpu_custom_call.1']
  %s0 = inlined_call_operand.<no memory space> [shape: f32[1], index: 0, kind: input, shape index: {}]
  %s1 = inlined_call_operand.hbm [shape: f32[8,32], index: 1, kind: input, shape index: {}]
  %s2 = inlined_call_operand.hbm [shape: f32[8,128], index: 2, kind: input, shape index: {}]
  %s3 = inlined_call_operand.hbm [shape: f32[32,64], index: 3, kind: input, shape index: {}]
  %s4 = inlined_call_operand.vmem [shape: f32[1,64], index: 4, kind: input, shape index: {}]
  %s5 = inlined_call_operand.hbm [shape: f32[64,128], index: 5, kind: input, shape index: {}]
  %s6 = inlined_call_operand.vmem [shape: f32[1,128], index: 6, kind: input, shape index: {}]
  %s7 = inlined_call_operand.hbm [shape: f32[128,128], index: 7, kind: input, shape index: {}]
  %s8 = inlined_call_operand.hbm [shape: f32[128,512], index: 8, kind: input, shape index: {}]
  %s9 = inlined_call_operand.vmem [shape: f32[1,512], index: 9, kind: input, shape index: {}]
  %s10 = inlined_call_operand.hbm [shape: f32[512,256], index: 10, kind: input, shape index: {}]
  %s11 = inlined_call_operand.vmem [shape: f32[1,256], index: 11, kind: input, shape index: {}]
  %s12 = inlined_call_operand.hbm [shape: f32[8,256], index: 12, kind: output, shape index: {0}]
  %s13 = inlined_call_operand.hbm [shape: f32[8,128], index: 13, kind: output, shape index: {1}]
  %s14 = inlined_call_operand.vmem [shape: f32[8,1], index: 14, kind: output, shape index: {2}]
  %15 = xla_tuple %s12, %s13, %s14
  %s16 = sld [smem:[#allocation0]]
  $region102: #{tpu_custom_call.1} parent=0
    _
  %s18 = ssub.s32 1, %s16
  %s19 = scalar_select 0, %s18, %s16
  %20 = sst [smem:[#allocation2]] %s0
  $region1: #{tpu_custom_call.1} parent=0
    #allocation3 [shape = 'u8[4096]{0}', space=vmem, size = 0x1000, scoped, tag = 'input window, operand 1, single buffered']
    #allocation4 [shape = 's32[1]{0}', space=sflag, size = 0x4, scoped, tag = 'scoped memory for tpu_custom_call.1']
    #allocation5 [shape = 's32[1]{0}', space=sflag, size = 0x4, scoped, tag = 'scoped memory for tpu_custom_call.1']
    #allocation6 [shape = 'u8[4096]{0}', space=vmem, size = 0x1000, scoped, tag = 'input window, operand 2, single buffered']
    #allocation7 [shape = 's32[1]{0}', space=sflag, size = 0x4, scoped, tag = 'scoped memory for tpu_custom_call.1']
    #allocation8 [shape = 'u8[16384]{0}', space=vmem, size = 0x4000, scoped, tag = 'input window, operand 3, single buffered']
    #allocation9 [shape = 'u8[32768]{0}', space=vmem, size = 0x8000, scoped, tag = 'input window, operand 5, single buffered']
    #allocation10 [shape = 's32[1]{0}', space=sflag, size = 0x4, scoped, tag = 'scoped memory for tpu_custom_call.1']
    #allocation11 [shape = 'u8[65536]{0}', space=vmem, size = 0x10000, scoped, tag = 'input window, operand 7, single buffered']
    #allocation12 [shape = 'u8[262144]{0}', space=vmem, size = 0x40000, scoped, tag = 'input window, operand 8, single buffered']
    #allocation13 [shape = 's32[1]{0}', space=sflag, size = 0x4, scoped, tag = 'scoped memory for tpu_custom_call.1']
    #allocation14 [shape = 'u8[524288]{0}', space=vmem, size = 0x80000, scoped, tag = 'input window, operand 10, single buffered']
    #allocation15 [shape = 'u8[8192]{0}', space=vmem, size = 0x2000, scoped, tag = 'output window, operand 0, single buffered']
    #allocation16 [shape = 'u8[4096]{0}', space=vmem, size = 0x1000, scoped, tag = 'output window, operand 1, single buffered']
    #allocation17 [shape = 's32[1]{0}', space=sflag, size = 0x4, scoped, tag = 'scoped memory for tpu_custom_call.1']
    %21 = vsyncpa [#allocation4], 0
    %22 = vsyncpa [#allocation7], 0
    %23 = vsyncpa [#allocation10], 0
    %24 = vsyncpa [#allocation13], 0
    %25 = vsyncpa [#allocation5], 0
    %26 = vsyncpa [#allocation17], 0
    // Predicated region
    $region2: #{tpu_custom_call.1} parent=1 // pred_check
      _
    $region3: #{tpu_custom_call.1} parent=1 // pred_check_branch
      %28 = sbr.rel (0) target = $region5
    $region4: #{tpu_custom_call.1} parent=1 // pred_region
      _
    $region5: #{tpu_custom_call.1} parent=1 // pred_fallthru
      _
    // Predicated region
    $region6: #{tpu_custom_call.1} parent=1 // pred_check
      _
    $region7: #{tpu_custom_call.1} parent=1 // pred_check_branch
      %30 = sbr.rel (0) target = $region9
    $region8: #{tpu_custom_call.1} parent=1 // pred_region
      %s32 = ssub.s32 128, 128
      %33 = vsyncadd [#allocation4], %s32
      %s35 = sshll.u32 [#allocation3], 4
      %s36 = int_to_ptr.vmem [resolvable:$true] %s35
      %38 = dma.hbm_to_vmem [thread:$0]  %s1, 128, %s36, [#allocation4]
    $region9: #{tpu_custom_call.1} parent=1 // pred_fallthru
      _
    // Predicated region
    $region10: #{tpu_custom_call.1} parent=1 // pred_check
      _
    $region11: #{tpu_custom_call.1} parent=1 // pred_check_branch
      %40 = sbr.rel (0) target = $region13
    $region12: #{tpu_custom_call.1} parent=1 // pred_region
      %s42 = ssub.s32 128, 128
      %43 = vsyncadd [#allocation7], %s42
      %s45 = sshll.u32 [#allocation6], 4
      %s46 = int_to_ptr.vmem [resolvable:$true] %s45
      %48 = dma.hbm_to_vmem [thread:$0]  %s2, 128, %s46, [#allocation7]
    $region13: #{tpu_custom_call.1} parent=1 // pred_fallthru
      _
    // Predicated region
    $region14: #{tpu_custom_call.1} parent=1 // pred_check
      _
    $region15: #{tpu_custom_call.1} parent=1 // pred_check_branch
      %50 = sbr.rel (0) target = $region17
    $region16: #{tpu_custom_call.1} parent=1 // pred_region
      %s52 = ssub.s32 512, 512
      %53 = vsyncadd [#allocation7], %s52
      %s54 = sshll.u32 [#allocation8], 4
      %s55 = int_to_ptr.vmem [resolvable:$true] %s54
      %60 = dma.hbm_to_vmem [thread:$0]  %s3, 512, %s55, [#allocation7], 128, 128, 8
    $region17: #{tpu_custom_call.1} parent=1 // pred_fallthru
      _
    // Predicated region
    $region18: #{tpu_custom_call.1} parent=1 // pred_check
      _
    $region19: #{tpu_custom_call.1} parent=1 // pred_check_branch
      %62 = sbr.rel (0) target = $region21
    $region20: #{tpu_custom_call.1} parent=1 // pred_region
      _
    $region21: #{tpu_custom_call.1} parent=1 // pred_fallthru
      _
    // Predicated region
    $region22: #{tpu_custom_call.1} parent=1 // pred_check
      _
    $region23: #{tpu_custom_call.1} parent=1 // pred_check_branch
      %64 = sbr.rel (0) target = $region25
    $region24: #{tpu_custom_call.1} parent=1 // pred_region
      %s66 = ssub.s32 1024, 1024
      %67 = vsyncadd [#allocation10], %s66
      %s68 = sshll.u32 [#allocation9], 4
      %s69 = int_to_ptr.vmem [resolvable:$true] %s68
      %74 = dma.hbm_to_vmem [thread:$0]  %s5, 1024, %s69, [#allocation10], 128, 128, 8
    $region25: #{tpu_custom_call.1} parent=1 // pred_fallthru
      _
    // Predicated region
    $region26: #{tpu_custom_call.1} parent=1 // pred_check
      _
    $region27: #{tpu_custom_call.1} parent=1 // pred_check_branch
      %76 = sbr.rel (0) target = $region29
    $region28: #{tpu_custom_call.1} parent=1 // pred_region
      _
    $region29: #{tpu_custom_call.1} parent=1 // pred_fallthru
      _
    // Predicated region
    $region30: #{tpu_custom_call.1} parent=1 // pred_check
      _
    $region31: #{tpu_custom_call.1} parent=1 // pred_check_branch
      %78 = sbr.rel (0) target = $region33
    $region32: #{tpu_custom_call.1} parent=1 // pred_region
      %s80 = ssub.s32 2048, 2048
      %81 = vsyncadd [#allocation10], %s80
      %s82 = sshll.u32 [#allocation11], 4
      %s83 = int_to_ptr.vmem [resolvable:$true] %s82
      %88 = dma.hbm_to_vmem [thread:$0]  %s7, 2048, %s83, [#allocation10], 128, 128, 8
    $region33: #{tpu_custom_call.1} parent=1 // pred_fallthru
      _
    // Predicated region
    $region34: #{tpu_custom_call.1} parent=1 // pred_check
      _
    $region35: #{tpu_custom_call.1} parent=1 // pred_check_branch
      %90 = sbr.rel (0) target = $region37
    $region36: #{tpu_custom_call.1} parent=1 // pred_region
      %s92 = ssub.s32 8192, 8192
      %93 = vsyncadd [#allocation13], %s92
      %s94 = sshll.u32 [#allocation12], 4
      %s95 = int_to_ptr.vmem [resolvable:$true] %s94
      %100 = dma.hbm_to_vmem [thread:$0]  %s8, 8192, %s95, [#allocation13], 512, 512, 32
    $region37: #{tpu_custom_call.1} parent=1 // pred_fallthru
      _
    // Predicated region
    $region38: #{tpu_custom_call.1} parent=1 // pred_check
      _
    $region39: #{tpu_custom_call.1} parent=1 // pred_check_branch
      %102 = sbr.rel (0) target = $region41
    $region40: #{tpu_custom_call.1} parent=1 // pred_region
      _
    $region41: #{tpu_custom_call.1} parent=1 // pred_fallthru
      _
    // Predicated region
    $region42: #{tpu_custom_call.1} parent=1 // pred_check
      _
    $region43: #{tpu_custom_call.1} parent=1 // pred_check_branch
      %104 = sbr.rel (0) target = $region45
    $region44: #{tpu_custom_call.1} parent=1 // pred_region
      %s106 = ssub.s32 16384, 16384
      %107 = vsyncadd [#allocation13], %s106
      %s108 = sshll.u32 [#allocation14], 4
      %s109 = int_to_ptr.vmem [resolvable:$true] %s108
      %114 = dma.hbm_to_vmem [thread:$0]  %s10, 16384, %s109, [#allocation13], 256, 256, 16
    $region45: #{tpu_custom_call.1} parent=1 // pred_fallthru
      _
    // Predicated region
    $region46: #{tpu_custom_call.1} parent=1 // pred_check
      _
    $region47: #{tpu_custom_call.1} parent=1 // pred_check_branch
      %116 = sbr.rel (0) target = $region49
    $region48: #{tpu_custom_call.1} parent=1 // pred_region
      _
    $region49: #{tpu_custom_call.1} parent=1 // pred_fallthru
      _
    // Predicated region
    $region50: #{tpu_custom_call.1} parent=1 // pred_check
      _
    $region51: #{tpu_custom_call.1} parent=1 // pred_check_branch
      %118 = sbr.rel (0) target = $region53
    $region52: #{tpu_custom_call.1} parent=1 // pred_region
      %119 = dma.done [#allocation4], 128
    $region53: #{tpu_custom_call.1} parent=1 // pred_fallthru
      _
    // Predicated region
    $region54: #{tpu_custom_call.1} parent=1 // pred_check
      _
    $region55: #{tpu_custom_call.1} parent=1 // pred_check_branch
      %121 = sbr.rel (0) target = $region57
    $region56: #{tpu_custom_call.1} parent=1 // pred_region
      %122 = dma.done [#allocation7], 128
    $region57: #{tpu_custom_call.1} parent=1 // pred_fallthru
      _
    // Predicated region
    $region58: #{tpu_custom_call.1} parent=1 // pred_check
      _
    $region59: #{tpu_custom_call.1} parent=1 // pred_check_branch
      %124 = sbr.rel (0) target = $region61
    $region60: #{tpu_custom_call.1} parent=1 // pred_region
      %125 = dma.done [#allocation7], 512
    $region61: #{tpu_custom_call.1} parent=1 // pred_fallthru
      _
    // Predicated region
    $region62: #{tpu_custom_call.1} parent=1 // pred_check
      _
    $region63: #{tpu_custom_call.1} parent=1 // pred_check_branch
      %127 = sbr.rel (0) target = $region65
    $region64: #{tpu_custom_call.1} parent=1 // pred_region
      %128 = dma.done [#allocation10], 1024
    $region65: #{tpu_custom_call.1} parent=1 // pred_fallthru
      _
    // Predicated region
    $region66: #{tpu_custom_call.1} parent=1 // pred_check
      _
    $region67: #{tpu_custom_call.1} parent=1 // pred_check_branch
      %130 = sbr.rel (0) target = $region69
    $region68: #{tpu_custom_call.1} parent=1 // pred_region
      %131 = dma.done [#allocation10], 2048
    $region69: #{tpu_custom_call.1} parent=1 // pred_fallthru
      _
    // Predicated region
    $region70: #{tpu_custom_call.1} parent=1 // pred_check
      _
    $region71: #{tpu_custom_call.1} parent=1 // pred_check_branch
      %133 = sbr.rel (0) target = $region73
    $region72: #{tpu_custom_call.1} parent=1 // pred_region
      %134 = dma.done [#allocation13], 8192
    $region73: #{tpu_custom_call.1} parent=1 // pred_fallthru
      _
    // Predicated region
    $region74: #{tpu_custom_call.1} parent=1 // pred_check
      _
    $region75: #{tpu_custom_call.1} parent=1 // pred_check_branch
      %136 = sbr.rel (0) target = $region77
    $region76: #{tpu_custom_call.1} parent=1 // pred_region
      %137 = dma.done [#allocation13], 16384
    $region77: #{tpu_custom_call.1} parent=1 // pred_fallthru
      _
    %s138 = sld [smem:[#allocation2]]
    %v139 = vstv %s138
    %v140 = vrcp.pop %v139
    %s141 = vtos %v140
    %v142 = vld [vmem:[#allocation3] sm:$0xff]
    %v143 = vld [vmem:[#allocation8] sm:$0xff]
    %v144 = vld [vmem:[#allocation8 + $0x8] sm:$0xff]
    %v145 = vld [vmem:[#allocation8 + $0x10] sm:$0xff]
    %v146 = vld [vmem:[#allocation8 + $0x18] sm:$0xff]
    %v147 = vld [vmem:[%s4] sm:$0x1]
    %v149 = vlaneseq
    %v150 = vshrl.u32 %v149, 7
    %v151 = vsub.s32 0, %v150
    %v152 = vrot.slane %v147, %v151
    %vm154 = vcmask 261120
    %v156 = vsel %vm154, %v142, 0
    %158 = vmatprep.subr.mxu0 0.0
    %159 = vmatpush1.msra.mxu0 %v143
    %160 = vmatprep.subr.mxu0 0.0
    %161 = vmatpush1.msra.mxu0 %v144
    %162 = vmatprep.subr.mxu0 0.0
    %163 = vmatpush1.msra.mxu0 %v145
    %164 = vmatprep.subr.mxu0 0.0
    %165 = vmatpush1.msra.mxu0 %v146
    %166 = vmatprep.subr.mxu0 0.0
    %167 = vmatpush1.msra.mxu0 0.0
    %168 = vmatprep.subr.mxu0 0.0
    %169 = vmatpush1.msra.mxu0 0.0
    %170 = vmatprep.subr.mxu0 0.0
    %171 = vmatpush1.msra.mxu0 0.0
    %172 = vmatprep.subr.mxu0 0.0
    %173 = vmatpush1.msra.mxu0 0.0
    %174 = vmatprep.subr.mxu0 0.0
    %175 = vmatpush1.msra.mxu0 0.0
    %176 = vmatprep.subr.mxu0 0.0
    %177 = vmatpush1.msra.mxu0 0.0
    %178 = vmatprep.subr.mxu0 0.0
    %179 = vmatpush1.msra.mxu0 0.0
    %180 = vmatprep.subr.mxu0 0.0
    %181 = vmatpush1.msra.mxu0 0.0
    %182 = vmatprep.subr.mxu0 0.0
    %183 = vmatpush1.msra.mxu0 0.0
    %184 = vmatprep.subr.mxu0 0.0
    %185 = vmatpush1.msra.mxu0 0.0
    %186 = vmatprep.subr.mxu0 0.0
    %187 = vmatpush1.msra.mxu0 0.0
    %188 = vmatprep.subr.mxu0 0.0
    %189 = vmatpush1.msra.mxu0 0.0
    %190 = vmatprep.subr.mxu0 0.0
    %191 = vmatpush1.msra.mxu0 0.0
    %192 = vmatprep.subr.mxu0 0.0
    %193 = vmatpush1.msra.mxu0 0.0
    %194 = vmatprep.subr.mxu0 0.0
    %195 = vmatpush1.msra.mxu0 0.0
    %196 = vmatprep.subr.mxu0 0.0
    %197 = vmatpush1.msra.mxu0 0.0
    %198 = vmatprep.subr.mxu0 0.0
    %199 = vmatpush1.msra.mxu0 0.0
    %200 = vmatprep.subr.mxu0 0.0
    %201 = vmatpush1.msra.mxu0 0.0
    %202 = vmatprep.subr.mxu0 0.0
    %203 = vmatpush1.msra.mxu0 0.0
    %204 = vmatprep.subr.mxu0 0.0
    %205 = vmatpush1.msra.mxu0 0.0
    %206 = vmatprep.subr.mxu0 0.0
    %207 = vmatpush1.msra.mxu0 0.0
    %208 = vmatprep.subr.mxu0 0.0
    %209 = vmatpush1.msra.mxu0 0.0
    %210 = vmatprep.subr.mxu0 0.0
    %211 = vmatpush1.msra.mxu0 0.0
    %212 = vmatprep.subr.mxu0 0.0
    %213 = vmatpush1.msra.mxu0 0.0
    %214 = vmatprep.subr.mxu0 0.0
    %215 = vmatpush1.msra.mxu0 0.0
    %216 = vmatprep.subr.mxu0 0.0
    %217 = vmatpush1.msra.mxu0 0.0
    %218 = vmatprep.subr.mxu0 0.0
    %219 = vmatpush1.msra.mxu0 0.0
    %220 = vmatprep.subr.mxu0 0.0
    %221 = vmatpush1.msra.mxu0 0.0
    %222 = vmatprep.mubr.f32.mxu0 0.0
    %223 = vmatmul.mubr.f32.gmra.mrb[0].mxu0 %v156
    %v224 = vpop.f32.mrb[0].mxu0
    %v225 = vadd.f32 %v152, %v224
    %v226 = vpop.f32.mrb[0].mxu0
    %227 = vdwg.mxu0
    %v228 = vmax.f32 %v225, 0.0
    %v229 = vld [vmem:[#allocation9] sm:$0xff]
    %v230 = vld [vmem:[#allocation9 + $0x8] sm:$0xff]
    %v231 = vld [vmem:[#allocation9 + $0x10] sm:$0xff]
    %v232 = vld [vmem:[#allocation9 + $0x18] sm:$0xff]
    %v233 = vld [vmem:[#allocation9 + $0x20] sm:$0xff]
    %v234 = vld [vmem:[#allocation9 + $0x28] sm:$0xff]
    %v235 = vld [vmem:[#allocation9 + $0x30] sm:$0xff]
    %v236 = vld [vmem:[#allocation9 + $0x38] sm:$0xff]
    %v237 = vld [vmem:[%s6] sm:$0x1]
    %v239 = vlaneseq
    %v240 = vshrl.u32 %v239, 7
    %v241 = vsub.s32 0, %v240
    %v242 = vrot.slane %v237, %v241
    %vm244 = vcmask 523264
    %v246 = vsel %vm244, %v228, 0
    %248 = vmatprep.subr.mxu0 0.0
    %249 = vmatpush1.msra.mxu0 %v229
    %250 = vmatprep.subr.mxu0 0.0
    %251 = vmatpush1.msra.mxu0 %v230
    %252 = vmatprep.subr.mxu0 0.0
    %253 = vmatpush1.msra.mxu0 %v231
    %254 = vmatprep.subr.mxu0 0.0
    %255 = vmatpush1.msra.mxu0 %v232
    %256 = vmatprep.subr.mxu0 0.0
    %257 = vmatpush1.msra.mxu0 %v233
    %258 = vmatprep.subr.mxu0 0.0
    %259 = vmatpush1.msra.mxu0 %v234
    %260 = vmatprep.subr.mxu0 0.0
    %261 = vmatpush1.msra.mxu0 %v235
    %262 = vmatprep.subr.mxu0 0.0
    %263 = vmatpush1.msra.mxu0 %v236
    %264 = vmatprep.subr.mxu0 0.0
    %265 = vmatpush1.msra.mxu0 0.0
    %266 = vmatprep.subr.mxu0 0.0
    %267 = vmatpush1.msra.mxu0 0.0
    %268 = vmatprep.subr.mxu0 0.0
    %269 = vmatpush1.msra.mxu0 0.0
    %270 = vmatprep.subr.mxu0 0.0
    %271 = vmatpush1.msra.mxu0 0.0
    %272 = vmatprep.subr.mxu0 0.0
    %273 = vmatpush1.msra.mxu0 0.0
    %274 = vmatprep.subr.mxu0 0.0
    %275 = vmatpush1.msra.mxu0 0.0
    %276 = vmatprep.subr.mxu0 0.0
    %277 = vmatpush1.msra.mxu0 0.0
    %278 = vmatprep.subr.mxu0 0.0
    %279 = vmatpush1.msra.mxu0 0.0
    %280 = vmatprep.subr.mxu0 0.0
    %281 = vmatpush1.msra.mxu0 0.0
    %282 = vmatprep.subr.mxu0 0.0
    %283 = vmatpush1.msra.mxu0 0.0
    %284 = vmatprep.subr.mxu0 0.0
    %285 = vmatpush1.msra.mxu0 0.0
    %286 = vmatprep.subr.mxu0 0.0
    %287 = vmatpush1.msra.mxu0 0.0
    %288 = vmatprep.subr.mxu0 0.0
    %289 = vmatpush1.msra.mxu0 0.0
    %290 = vmatprep.subr.mxu0 0.0
    %291 = vmatpush1.msra.mxu0 0.0
    %292 = vmatprep.subr.mxu0 0.0
    %293 = vmatpush1.msra.mxu0 0.0
    %294 = vmatprep.subr.mxu0 0.0
    %295 = vmatpush1.msra.mxu0 0.0
    %296 = vmatprep.subr.mxu0 0.0
    %297 = vmatpush1.msra.mxu0 0.0
    %298 = vmatprep.subr.mxu0 0.0
    %299 = vmatpush1.msra.mxu0 0.0
    %300 = vmatprep.subr.mxu0 0.0
    %301 = vmatpush1.msra.mxu0 0.0
    %302 = vmatprep.subr.mxu0 0.0
    %303 = vmatpush1.msra.mxu0 0.0
    %304 = vmatprep.subr.mxu0 0.0
    %305 = vmatpush1.msra.mxu0 0.0
    %306 = vmatprep.subr.mxu0 0.0
    %307 = vmatpush1.msra.mxu0 0.0
    %308 = vmatprep.subr.mxu0 0.0
    %309 = vmatpush1.msra.mxu0 0.0
    %310 = vmatprep.subr.mxu0 0.0
    %311 = vmatpush1.msra.mxu0 0.0
    %312 = vmatprep.mubr.f32.mxu0 0.0
    %313 = vmatmul.mubr.f32.gmra.mrb[0].mxu0 %v246
    %v314 = vpop.f32.mrb[0].mxu0
    %v315 = vadd.f32 %v242, %v314
    %v316 = vpop.f32.mrb[0].mxu0
    %317 = vdwg.mxu0
    %v318 = vld [vmem:[#allocation11] sm:$0xff]
    %v319 = vld [vmem:[#allocation11 + $0x8] sm:$0xff]
    %v320 = vld [vmem:[#allocation11 + $0x10] sm:$0xff]
    %v321 = vld [vmem:[#allocation11 + $0x18] sm:$0xff]
    %v322 = vld [vmem:[#allocation11 + $0x20] sm:$0xff]
    %v323 = vld [vmem:[#allocation11 + $0x28] sm:$0xff]
    %v324 = vld [vmem:[#allocation11 + $0x30] sm:$0xff]
    %v325 = vld [vmem:[#allocation11 + $0x38] sm:$0xff]
    %v326 = vld [vmem:[#allocation11 + $0x40] sm:$0xff]
    %v327 = vld [vmem:[#allocation11 + $0x48] sm:$0xff]
    %v328 = vld [vmem:[#allocation11 + $0x50] sm:$0xff]
    %v329 = vld [vmem:[#allocation11 + $0x58] sm:$0xff]
    %v330 = vld [vmem:[#allocation11 + $0x60] sm:$0xff]
    %v331 = vld [vmem:[#allocation11 + $0x68] sm:$0xff]
    %v332 = vld [vmem:[#allocation11 + $0x70] sm:$0xff]
    %v333 = vld [vmem:[#allocation11 + $0x78] sm:$0xff]
    %334 = vmax.xlane.f32.xlu0 %v315
    %v335 = vpop.xlane.xlu0 %334
    %v336 = vsub.f32 %v315, %v335
    %v337 = vmul.f32 %v336, 1.442695
    %v338 = vpow.pop %v337
    %339 = vmatprep.subr.mxu0 0.0
    %340 = vmatpush1.msra.mxu0 %v318
    %341 = vmatprep.subr.mxu0 0.0
    %342 = vmatpush1.msra.mxu0 %v319
    %343 = vmatprep.subr.mxu0 0.0
    %344 = vmatpush1.msra.mxu0 %v320
    %345 = vmatprep.subr.mxu0 0.0
    %346 = vmatpush1.msra.mxu0 %v321
    %347 = vmatprep.subr.mxu0 0.0
    %348 = vmatpush1.msra.mxu0 %v322
    %349 = vmatprep.subr.mxu0 0.0
    %350 = vmatpush1.msra.mxu0 %v323
    %351 = vmatprep.subr.mxu0 0.0
    %352 = vmatpush1.msra.mxu0 %v324
    %353 = vmatprep.subr.mxu0 0.0
    %354 = vmatpush1.msra.mxu0 %v325
    %355 = vmatprep.subr.mxu0 0.0
    %356 = vmatpush1.msra.mxu0 %v326
    %357 = vmatprep.subr.mxu0 0.0
    %358 = vmatpush1.msra.mxu0 %v327
    %359 = vmatprep.subr.mxu0 0.0
    %360 = vmatpush1.msra.mxu0 %v328
    %361 = vmatprep.subr.mxu0 0.0
    %362 = vmatpush1.msra.mxu0 %v329
    %363 = vmatprep.subr.mxu0 0.0
    %364 = vmatpush1.msra.mxu0 %v330
    %365 = vmatprep.subr.mxu0 0.0
    %366 = vmatpush1.msra.mxu0 %v331
    %367 = vmatprep.subr.mxu0 0.0
    %368 = vmatpush1.msra.mxu0 %v332
    %369 = vmatprep.subr.mxu0 0.0
    %370 = vmatpush1.msra.mxu0 %v333
    %371 = vmatprep.subr.mxu0 0.0
    %372 = vmatpush1.msra.mxu0 0.0
    %373 = vmatprep.subr.mxu0 0.0
    %374 = vmatpush1.msra.mxu0 0.0
    %375 = vmatprep.subr.mxu0 0.0
    %376 = vmatpush1.msra.mxu0 0.0
    %377 = vmatprep.subr.mxu0 0.0
    %378 = vmatpush1.msra.mxu0 0.0
    %379 = vmatprep.subr.mxu0 0.0
    %380 = vmatpush1.msra.mxu0 0.0
    %381 = vmatprep.subr.mxu0 0.0
    %382 = vmatpush1.msra.mxu0 0.0
    %383 = vmatprep.subr.mxu0 0.0
    %384 = vmatpush1.msra.mxu0 0.0
    %385 = vmatprep.subr.mxu0 0.0
    %386 = vmatpush1.msra.mxu0 0.0
    %387 = vmatprep.subr.mxu0 0.0
    %388 = vmatpush1.msra.mxu0 0.0
    %389 = vmatprep.subr.mxu0 0.0
    %390 = vmatpush1.msra.mxu0 0.0
    %391 = vmatprep.subr.mxu0 0.0
    %392 = vmatpush1.msra.mxu0 0.0
    %393 = vmatprep.subr.mxu0 0.0
    %394 = vmatpush1.msra.mxu0 0.0
    %395 = vmatprep.subr.mxu0 0.0
    %396 = vmatpush1.msra.mxu0 0.0
    %397 = vmatprep.subr.mxu0 0.0
    %398 = vmatpush1.msra.mxu0 0.0
    %399 = vmatprep.subr.mxu0 0.0
    %400 = vmatpush1.msra.mxu0 0.0
    %401 = vmatprep.subr.mxu0 0.0
    %402 = vmatpush1.msra.mxu0 0.0
    %403 = vmatprep.mubr.f32.mxu0 0.0
    %404 = vmatmul.mubr.f32.gmra.mrb[0].mxu0 %v338
    %v405 = vpop.f32.mrb[0].mxu0
    %v406 = vadd.f32 0.0, %v405
    %v407 = vpop.f32.mrb[0].mxu0
    %408 = vdwg.mxu0
    %v409 = vrcp.pop %v406
    %v410 = vmul.f32 %v338, %v409
    %v411 = vld [vmem:[#allocation6] sm:$0xff]
    %v412 = vadd.f32 %v411, 1e-08
    %v413 = vlog2.pop %v412
    %v414 = vmul.f32 %v413, 0.6931472
    %v415 = vsub.f32 0.0, %v414
    %v416 = vadd.f32 %v415, 1e-08
    %v417 = vlog2.pop %v416
    %v418 = vmul.f32 %v417, 0.6931472
    %v419 = vsub.f32 0.0, %v418
    %v420 = vadd.f32 %v315, %v419
    %v421 = vstv %s141
    %v422 = vmul.f32 %v420, %v421
    %423 = vmax.xlane.f32.xlu0 %v422
    %v424 = vpop.xlane.xlu0 %423
    %v425 = vsub.f32 %v422, %v424
    %v426 = vmul.f32 %v425, 1.442695
    %v427 = vpow.pop %v426
    %428 = vmatprep.subr.mxu0 0.0
    %429 = vmatpush1.msra.mxu0 %v318
    %430 = vmatprep.subr.mxu0 0.0
    %431 = vmatpush1.msra.mxu0 %v319
    %432 = vmatprep.subr.mxu0 0.0
    %433 = vmatpush1.msra.mxu0 %v320
    %434 = vmatprep.subr.mxu0 0.0
    %435 = vmatpush1.msra.mxu0 %v321
    %436 = vmatprep.subr.mxu0 0.0
    %437 = vmatpush1.msra.mxu0 %v322
    %438 = vmatprep.subr.mxu0 0.0
    %439 = vmatpush1.msra.mxu0 %v323
    %440 = vmatprep.subr.mxu0 0.0
    %441 = vmatpush1.msra.mxu0 %v324
    %442 = vmatprep.subr.mxu0 0.0
    %443 = vmatpush1.msra.mxu0 %v325
    %444 = vmatprep.subr.mxu0 0.0
    %445 = vmatpush1.msra.mxu0 %v326
    %446 = vmatprep.subr.mxu0 0.0
    %447 = vmatpush1.msra.mxu0 %v327
    %448 = vmatprep.subr.mxu0 0.0
    %449 = vmatpush1.msra.mxu0 %v328
    %450 = vmatprep.subr.mxu0 0.0
    %451 = vmatpush1.msra.mxu0 %v329
    %452 = vmatprep.subr.mxu0 0.0
    %453 = vmatpush1.msra.mxu0 %v330
    %454 = vmatprep.subr.mxu0 0.0
    %455 = vmatpush1.msra.mxu0 %v331
    %456 = vmatprep.subr.mxu0 0.0
    %457 = vmatpush1.msra.mxu0 %v332
    %458 = vmatprep.subr.mxu0 0.0
    %459 = vmatpush1.msra.mxu0 %v333
    %460 = vmatprep.subr.mxu0 0.0
    %461 = vmatpush1.msra.mxu0 0.0
    %462 = vmatprep.subr.mxu0 0.0
    %463 = vmatpush1.msra.mxu0 0.0
    %464 = vmatprep.subr.mxu0 0.0
    %465 = vmatpush1.msra.mxu0 0.0
    %466 = vmatprep.subr.mxu0 0.0
    %467 = vmatpush1.msra.mxu0 0.0
    %468 = vmatprep.subr.mxu0 0.0
    %469 = vmatpush1.msra.mxu0 0.0
    %470 = vmatprep.subr.mxu0 0.0
    %471 = vmatpush1.msra.mxu0 0.0
    %472 = vmatprep.subr.mxu0 0.0
    %473 = vmatpush1.msra.mxu0 0.0
    %474 = vmatprep.subr.mxu0 0.0
    %475 = vmatpush1.msra.mxu0 0.0
    %476 = vmatprep.subr.mxu0 0.0
    %477 = vmatpush1.msra.mxu0 0.0
    %478 = vmatprep.subr.mxu0 0.0
    %479 = vmatpush1.msra.mxu0 0.0
    %480 = vmatprep.subr.mxu0 0.0
    %481 = vmatpush1.msra.mxu0 0.0
    %482 = vmatprep.subr.mxu0 0.0
    %483 = vmatpush1.msra.mxu0 0.0
    %484 = vmatprep.subr.mxu0 0.0
    %485 = vmatpush1.msra.mxu0 0.0
    %486 = vmatprep.subr.mxu0 0.0
    %487 = vmatpush1.msra.mxu0 0.0
    %488 = vmatprep.subr.mxu0 0.0
    %489 = vmatpush1.msra.mxu0 0.0
    %490 = vmatprep.subr.mxu0 0.0
    %491 = vmatpush1.msra.mxu0 0.0
    %492 = vmatprep.mubr.f32.mxu0 0.0
    %493 = vmatmul.mubr.f32.gmra.mrb[0].mxu0 %v427
    %v494 = vpop.f32.mrb[0].mxu0
    %v495 = vadd.f32 0.0, %v494
    %v496 = vpop.f32.mrb[0].mxu0
    %497 = vdwg.mxu0
    %v498 = vrcp.pop %v495
    %v499 = vmul.f32 %v427, %v498
    %v500 = vld [vmem:[#allocation12] sm:$0xff]
    %v501 = vld [vmem:[#allocation12 + $0x8] sm:$0xff]
    %v502 = vld [vmem:[#allocation12 + $0x10] sm:$0xff]
    %v503 = vld [vmem:[#allocation12 + $0x18] sm:$0xff]
    %v504 = vld [vmem:[#allocation12 + $0x20] sm:$0xff]
    %v505 = vld [vmem:[#allocation12 + $0x28] sm:$0xff]
    %v506 = vld [vmem:[#allocation12 + $0x30] sm:$0xff]
    %v507 = vld [vmem:[#allocation12 + $0x38] sm:$0xff]
    %v508 = vld [vmem:[#allocation12 + $0x40] sm:$0xff]
    %v509 = vld [vmem:[#allocation12 + $0x48] sm:$0xff]
    %v510 = vld [vmem:[#allocation12 + $0x50] sm:$0xff]
    %v511 = vld [vmem:[#allocation12 + $0x58] sm:$0xff]
    %v512 = vld [vmem:[#allocation12 + $0x60] sm:$0xff]
    %v513 = vld [vmem:[#allocation12 + $0x68] sm:$0xff]
    %v514 = vld [vmem:[#allocation12 + $0x70] sm:$0xff]
    %v515 = vld [vmem:[#allocation12 + $0x78] sm:$0xff]
    %v516 = vld [vmem:[#allocation12 + $0x80] sm:$0xff]
    %v517 = vld [vmem:[#allocation12 + $0x88] sm:$0xff]
    %v518 = vld [vmem:[#allocation12 + $0x90] sm:$0xff]
    %v519 = vld [vmem:[#allocation12 + $0x98] sm:$0xff]
    %v520 = vld [vmem:[#allocation12 + $0xa0] sm:$0xff]
    %v521 = vld [vmem:[#allocation12 + $0xa8] sm:$0xff]
    %v522 = vld [vmem:[#allocation12 + $0xb0] sm:$0xff]
    %v523 = vld [vmem:[#allocation12 + $0xb8] sm:$0xff]
    %v524 = vld [vmem:[#allocation12 + $0xc0] sm:$0xff]
    %v525 = vld [vmem:[#allocation12 + $0xc8] sm:$0xff]
    %v526 = vld [vmem:[#allocation12 + $0xd0] sm:$0xff]
    %v527 = vld [vmem:[#allocation12 + $0xd8] sm:$0xff]
    %v528 = vld [vmem:[#allocation12 + $0xe0] sm:$0xff]
    %v529 = vld [vmem:[#allocation12 + $0xe8] sm:$0xff]
    %v530 = vld [vmem:[#allocation12 + $0xf0] sm:$0xff]
    %v531 = vld [vmem:[#allocation12 + $0xf8] sm:$0xff]
    %v532 = vld [vmem:[#allocation12 + $0x100] sm:$0xff]
    %v533 = vld [vmem:[#allocation12 + $0x108] sm:$0xff]
    %v534 = vld [vmem:[#allocation12 + $0x110] sm:$0xff]
    %v535 = vld [vmem:[#allocation12 + $0x118] sm:$0xff]
    %v536 = vld [vmem:[#allocation12 + $0x120] sm:$0xff]
    %v537 = vld [vmem:[#allocation12 + $0x128] sm:$0xff]
    %v538 = vld [vmem:[#allocation12 + $0x130] sm:$0xff]
    %v539 = vld [vmem:[#allocation12 + $0x138] sm:$0xff]
    %v540 = vld [vmem:[#allocation12 + $0x140] sm:$0xff]
    %v541 = vld [vmem:[#allocation12 + $0x148] sm:$0xff]
    %v542 = vld [vmem:[#allocation12 + $0x150] sm:$0xff]
    %v543 = vld [vmem:[#allocation12 + $0x158] sm:$0xff]
    %v544 = vld [vmem:[#allocation12 + $0x160] sm:$0xff]
    %v545 = vld [vmem:[#allocation12 + $0x168] sm:$0xff]
    %v546 = vld [vmem:[#allocation12 + $0x170] sm:$0xff]
    %v547 = vld [vmem:[#allocation12 + $0x178] sm:$0xff]
    %v548 = vld [vmem:[#allocation12 + $0x180] sm:$0xff]
    %v549 = vld [vmem:[#allocation12 + $0x188] sm:$0xff]
    %v550 = vld [vmem:[#allocation12 + $0x190] sm:$0xff]
    %v551 = vld [vmem:[#allocation12 + $0x198] sm:$0xff]
    %v552 = vld [vmem:[#allocation12 + $0x1a0] sm:$0xff]
    %v553 = vld [vmem:[#allocation12 + $0x1a8] sm:$0xff]
    %v554 = vld [vmem:[#allocation12 + $0x1b0] sm:$0xff]
    %v555 = vld [vmem:[#allocation12 + $0x1b8] sm:$0xff]
    %v556 = vld [vmem:[#allocation12 + $0x1c0] sm:$0xff]
    %v557 = vld [vmem:[#allocation12 + $0x1c8] sm:$0xff]
    %v558 = vld [vmem:[#allocation12 + $0x1d0] sm:$0xff]
    %v559 = vld [vmem:[#allocation12 + $0x1d8] sm:$0xff]
    %v560 = vld [vmem:[#allocation12 + $0x1e0] sm:$0xff]
    %v561 = vld [vmem:[#allocation12 + $0x1e8] sm:$0xff]
    %v562 = vld [vmem:[#allocation12 + $0x1f0] sm:$0xff]
    %v563 = vld [vmem:[#allocation12 + $0x1f8] sm:$0xff]
    %v564 = vld [vmem:[%s9] sm:$0xf]
    %v566 = vlaneseq
    %v567 = vshrl.u32 %v566, 7
    %v568 = vsub.s32 0, %v567
    %v569 = vrot.slane %v564, %v568
    %v570 = vlaneseq
    %v571 = vshrl.u32 %v570, 7
    %v572 = vsub.s32 1, %v571
    %v573 = vrot.slane %v564, %v572
    %v574 = vlaneseq
    %v575 = vshrl.u32 %v574, 7
    %v576 = vsub.s32 2, %v575
    %v577 = vrot.slane %v564, %v576
    %v578 = vlaneseq
    %v579 = vshrl.u32 %v578, 7
    %v580 = vsub.s32 3, %v579
    %v581 = vrot.slane %v564, %v580
    %586 = vmatprep.subr.mxu0 %v501
    %587 = vmatpush1.msra.mxu0 %v500
    %588 = vmatprep.subr.mxu0 %v505
    %589 = vmatpush1.msra.mxu0 %v504
    %590 = vmatprep.subr.mxu0 %v509
    %591 = vmatpush1.msra.mxu0 %v508
    %592 = vmatprep.subr.mxu0 %v513
    %593 = vmatpush1.msra.mxu0 %v512
    %594 = vmatprep.subr.mxu0 %v517
    %595 = vmatpush1.msra.mxu0 %v516
    %596 = vmatprep.subr.mxu0 %v521
    %597 = vmatpush1.msra.mxu0 %v520
    %598 = vmatprep.subr.mxu0 %v525
    %599 = vmatpush1.msra.mxu0 %v524
    %600 = vmatprep.subr.mxu0 %v529
    %601 = vmatpush1.msra.mxu0 %v528
    %602 = vmatprep.subr.mxu0 %v533
    %603 = vmatpush1.msra.mxu0 %v532
    %604 = vmatprep.subr.mxu0 %v537
    %605 = vmatpush1.msra.mxu0 %v536
    %606 = vmatprep.subr.mxu0 %v541
    %607 = vmatpush1.msra.mxu0 %v540
    %608 = vmatprep.subr.mxu0 %v545
    %609 = vmatpush1.msra.mxu0 %v544
    %610 = vmatprep.subr.mxu0 %v549
    %611 = vmatpush1.msra.mxu0 %v548
    %612 = vmatprep.subr.mxu0 %v553
    %613 = vmatpush1.msra.mxu0 %v552
    %614 = vmatprep.subr.mxu0 %v557
    %615 = vmatpush1.msra.mxu0 %v556
    %616 = vmatprep.subr.mxu0 %v561
    %617 = vmatpush1.msra.mxu0 %v560
    %618 = vmatprep.subr.mxu0 0.0
    %619 = vmatpush1.msra.mxu0 0.0
    %620 = vmatprep.subr.mxu0 0.0
    %621 = vmatpush1.msra.mxu0 0.0
    %622 = vmatprep.subr.mxu0 0.0
    %623 = vmatpush1.msra.mxu0 0.0
    %624 = vmatprep.subr.mxu0 0.0
    %625 = vmatpush1.msra.mxu0 0.0
    %626 = vmatprep.subr.mxu0 0.0
    %627 = vmatpush1.msra.mxu0 0.0
    %628 = vmatprep.subr.mxu0 0.0
    %629 = vmatpush1.msra.mxu0 0.0
    %630 = vmatprep.subr.mxu0 0.0
    %631 = vmatpush1.msra.mxu0 0.0
    %632 = vmatprep.subr.mxu0 0.0
    %633 = vmatpush1.msra.mxu0 0.0
    %634 = vmatprep.subr.mxu0 0.0
    %635 = vmatpush1.msra.mxu0 0.0
    %636 = vmatprep.subr.mxu0 0.0
    %637 = vmatpush1.msra.mxu0 0.0
    %638 = vmatprep.subr.mxu0 0.0
    %639 = vmatpush1.msra.mxu0 0.0
    %640 = vmatprep.subr.mxu0 0.0
    %641 = vmatpush1.msra.mxu0 0.0
    %642 = vmatprep.subr.mxu0 0.0
    %643 = vmatpush1.msra.mxu0 0.0
    %644 = vmatprep.subr.mxu0 0.0
    %645 = vmatpush1.msra.mxu0 0.0
    %646 = vmatprep.subr.mxu0 0.0
    %647 = vmatpush1.msra.mxu0 0.0
    %648 = vmatprep.subr.mxu0 0.0
    %649 = vmatpush1.msra.mxu0 0.0
    %650 = vmatprep.mubr.f32.mxu0 0.0
    %651 = vmatmul.mubr.f32.gmra.mrb[0].mxu0 %v499
    %v652 = vpop.f32.mrb[0].mxu0
    %v653 = vadd.f32 %v569, %v652
    %v654 = vpop.f32.mrb[0].mxu0
    %v655 = vadd.f32 %v573, %v654
    %656 = vdwg.mxu0
    %657 = vmatprep.subr.mxu0 %v503
    %658 = vmatpush1.msra.mxu0 %v502
    %659 = vmatprep.subr.mxu0 %v507
    %660 = vmatpush1.msra.mxu0 %v506
    %661 = vmatprep.subr.mxu0 %v511
    %662 = vmatpush1.msra.mxu0 %v510
    %663 = vmatprep.subr.mxu0 %v515
    %664 = vmatpush1.msra.mxu0 %v514
    %665 = vmatprep.subr.mxu0 %v519
    %666 = vmatpush1.msra.mxu0 %v518
    %667 = vmatprep.subr.mxu0 %v523
    %668 = vmatpush1.msra.mxu0 %v522
    %669 = vmatprep.subr.mxu0 %v527
    %670 = vmatpush1.msra.mxu0 %v526
    %671 = vmatprep.subr.mxu0 %v531
    %672 = vmatpush1.msra.mxu0 %v530
    %673 = vmatprep.subr.mxu0 %v535
    %674 = vmatpush1.msra.mxu0 %v534
    %675 = vmatprep.subr.mxu0 %v539
    %676 = vmatpush1.msra.mxu0 %v538
    %677 = vmatprep.subr.mxu0 %v543
    %678 = vmatpush1.msra.mxu0 %v542
    %679 = vmatprep.subr.mxu0 %v547
    %680 = vmatpush1.msra.mxu0 %v546
    %681 = vmatprep.subr.mxu0 %v551
    %682 = vmatpush1.msra.mxu0 %v550
    %683 = vmatprep.subr.mxu0 %v555
    %684 = vmatpush1.msra.mxu0 %v554
    %685 = vmatprep.subr.mxu0 %v559
    %686 = vmatpush1.msra.mxu0 %v558
    %687 = vmatprep.subr.mxu0 %v563
    %688 = vmatpush1.msra.mxu0 %v562
    %689 = vmatprep.subr.mxu0 0.0
    %690 = vmatpush1.msra.mxu0 0.0
    %691 = vmatprep.subr.mxu0 0.0
    %692 = vmatpush1.msra.mxu0 0.0
    %693 = vmatprep.subr.mxu0 0.0
    %694 = vmatpush1.msra.mxu0 0.0
    %695 = vmatprep.subr.mxu0 0.0
    %696 = vmatpush1.msra.mxu0 0.0
    %697 = vmatprep.subr.mxu0 0.0
    %698 = vmatpush1.msra.mxu0 0.0
    %699 = vmatprep.subr.mxu0 0.0
    %700 = vmatpush1.msra.mxu0 0.0
    %701 = vmatprep.subr.mxu0 0.0
    %702 = vmatpush1.msra.mxu0 0.0
    %703 = vmatprep.subr.mxu0 0.0
    %704 = vmatpush1.msra.mxu0 0.0
    %705 = vmatprep.subr.mxu0 0.0
    %706 = vmatpush1.msra.mxu0 0.0
    %707 = vmatprep.subr.mxu0 0.0
    %708 = vmatpush1.msra.mxu0 0.0
    %709 = vmatprep.subr.mxu0 0.0
    %710 = vmatpush1.msra.mxu0 0.0
    %711 = vmatprep.subr.mxu0 0.0
    %712 = vmatpush1.msra.mxu0 0.0
    %713 = vmatprep.subr.mxu0 0.0
    %714 = vmatpush1.msra.mxu0 0.0
    %715 = vmatprep.subr.mxu0 0.0
    %716 = vmatpush1.msra.mxu0 0.0
    %717 = vmatprep.subr.mxu0 0.0
    %718 = vmatpush1.msra.mxu0 0.0
    %719 = vmatprep.subr.mxu0 0.0
    %720 = vmatpush1.msra.mxu0 0.0
    %721 = vmatprep.mubr.f32.mxu0 0.0
    %722 = vmatmul.mubr.f32.gmra.mrb[0].mxu0 %v499
    %v723 = vpop.f32.mrb[0].mxu0
    %v724 = vadd.f32 %v577, %v723
    %v725 = vpop.f32.mrb[0].mxu0
    %v726 = vadd.f32 %v581, %v725
    %727 = vdwg.mxu0
    %v728 = vmax.f32 %v653, 0.0
    %v729 = vmax.f32 %v655, 0.0
    %v730 = vmax.f32 %v724, 0.0
    %v731 = vmax.f32 %v726, 0.0
    %v732 = vld [vmem:[#allocation14] sm:$0xff]
    %v733 = vld [vmem:[#allocation14 + $0x8] sm:$0xff]
    %v734 = vld [vmem:[#allocation14 + $0x10] sm:$0xff]
    %v735 = vld [vmem:[#allocation14 + $0x18] sm:$0xff]
    %v736 = vld [vmem:[#allocation14 + $0x20] sm:$0xff]
    %v737 = vld [vmem:[#allocation14 + $0x28] sm:$0xff]
    %v738 = vld [vmem:[#allocation14 + $0x30] sm:$0xff]
    %v739 = vld [vmem:[#allocation14 + $0x38] sm:$0xff]
    %v740 = vld [vmem:[#allocation14 + $0x40] sm:$0xff]
    %v741 = vld [vmem:[#allocation14 + $0x48] sm:$0xff]
    %v742 = vld [vmem:[#allocation14 + $0x50] sm:$0xff]
    %v743 = vld [vmem:[#allocation14 + $0x58] sm:$0xff]
    %v744 = vld [vmem:[#allocation14 + $0x60] sm:$0xff]
    %v745 = vld [vmem:[#allocation14 + $0x68] sm:$0xff]
    %v746 = vld [vmem:[#allocation14 + $0x70] sm:$0xff]
    %v747 = vld [vmem:[#allocation14 + $0x78] sm:$0xff]
    %v748 = vld [vmem:[#allocation14 + $0x80] sm:$0xff]
    %v749 = vld [vmem:[#allocation14 + $0x88] sm:$0xff]
    %v750 = vld [vmem:[#allocation14 + $0x90] sm:$0xff]
    %v751 = vld [vmem:[#allocation14 + $0x98] sm:$0xff]
    %v752 = vld [vmem:[#allocation14 + $0xa0] sm:$0xff]
    %v753 = vld [vmem:[#allocation14 + $0xa8] sm:$0xff]
    %v754 = vld [vmem:[#allocation14 + $0xb0] sm:$0xff]
    %v755 = vld [vmem:[#allocation14 + $0xb8] sm:$0xff]
    %v756 = vld [vmem:[#allocation14 + $0xc0] sm:$0xff]
    %v757 = vld [vmem:[#allocation14 + $0xc8] sm:$0xff]
    %v758 = vld [vmem:[#allocation14 + $0xd0] sm:$0xff]
    %v759 = vld [vmem:[#allocation14 + $0xd8] sm:$0xff]
    %v760 = vld [vmem:[#allocation14 + $0xe0] sm:$0xff]
    %v761 = vld [vmem:[#allocation14 + $0xe8] sm:$0xff]
    %v762 = vld [vmem:[#allocation14 + $0xf0] sm:$0xff]
    %v763 = vld [vmem:[#allocation14 + $0xf8] sm:$0xff]
    %v764 = vld [vmem:[#allocation14 + $0x100] sm:$0xff]
    %v765 = vld [vmem:[#allocation14 + $0x108] sm:$0xff]
    %v766 = vld [vmem:[#allocation14 + $0x110] sm:$0xff]
    %v767 = vld [vmem:[#allocation14 + $0x118] sm:$0xff]
    %v768 = vld [vmem:[#allocation14 + $0x120] sm:$0xff]
    %v769 = vld [vmem:[#allocation14 + $0x128] sm:$0xff]
    %v770 = vld [vmem:[#allocation14 + $0x130] sm:$0xff]
    %v771 = vld [vmem:[#allocation14 + $0x138] sm:$0xff]
    %v772 = vld [vmem:[#allocation14 + $0x140] sm:$0xff]
    %v773 = vld [vmem:[#allocation14 + $0x148] sm:$0xff]
    %v774 = vld [vmem:[#allocation14 + $0x150] sm:$0xff]
    %v775 = vld [vmem:[#allocation14 + $0x158] sm:$0xff]
    %v776 = vld [vmem:[#allocation14 + $0x160] sm:$0xff]
    %v777 = vld [vmem:[#allocation14 + $0x168] sm:$0xff]
    %v778 = vld [vmem:[#allocation14 + $0x170] sm:$0xff]
    %v779 = vld [vmem:[#allocation14 + $0x178] sm:$0xff]
    %v780 = vld [vmem:[#allocation14 + $0x180] sm:$0xff]
    %v781 = vld [vmem:[#allocation14 + $0x188] sm:$0xff]
    %v782 = vld [vmem:[#allocation14 + $0x190] sm:$0xff]
    %v783 = vld [vmem:[#allocation14 + $0x198] sm:$0xff]
    %v784 = vld [vmem:[#allocation14 + $0x1a0] sm:$0xff]
    %v785 = vld [vmem:[#allocation14 + $0x1a8] sm:$0xff]
    %v786 = vld [vmem:[#allocation14 + $0x1b0] sm:$0xff]
    %v787 = vld [vmem:[#allocation14 + $0x1b8] sm:$0xff]
    %v788 = vld [vmem:[#allocation14 + $0x1c0] sm:$0xff]
    %v789 = vld [vmem:[#allocation14 + $0x1c8] sm:$0xff]
    %v790 = vld [vmem:[#allocation14 + $0x1d0] sm:$0xff]
    %v791 = vld [vmem:[#allocation14 + $0x1d8] sm:$0xff]
    %v792 = vld [vmem:[#allocation14 + $0x1e0] sm:$0xff]
    %v793 = vld [vmem:[#allocation14 + $0x1e8] sm:$0xff]
    %v794 = vld [vmem:[#allocation14 + $0x1f0] sm:$0xff]
    %v795 = vld [vmem:[#allocation14 + $0x1f8] sm:$0xff]
    %v796 = vld [vmem:[#allocation14 + $0x200] sm:$0xff]
    %v797 = vld [vmem:[#allocation14 + $0x208] sm:$0xff]
    %v798 = vld [vmem:[#allocation14 + $0x210] sm:$0xff]
    %v799 = vld [vmem:[#allocation14 + $0x218] sm:$0xff]
    %v800 = vld [vmem:[#allocation14 + $0x220] sm:$0xff]
    %v801 = vld [vmem:[#allocation14 + $0x228] sm:$0xff]
    %v802 = vld [vmem:[#allocation14 + $0x230] sm:$0xff]
    %v803 = vld [vmem:[#allocation14 + $0x238] sm:$0xff]
    %v804 = vld [vmem:[#allocation14 + $0x240] sm:$0xff]
    %v805 = vld [vmem:[#allocation14 + $0x248] sm:$0xff]
    %v806 = vld [vmem:[#allocation14 + $0x250] sm:$0xff]
    %v807 = vld [vmem:[#allocation14 + $0x258] sm:$0xff]
    %v808 = vld [vmem:[#allocation14 + $0x260] sm:$0xff]
    %v809 = vld [vmem:[#allocation14 + $0x268] sm:$0xff]
    %v810 = vld [vmem:[#allocation14 + $0x270] sm:$0xff]
    %v811 = vld [vmem:[#allocation14 + $0x278] sm:$0xff]
    %v812 = vld [vmem:[#allocation14 + $0x280] sm:$0xff]
    %v813 = vld [vmem:[#allocation14 + $0x288] sm:$0xff]
    %v814 = vld [vmem:[#allocation14 + $0x290] sm:$0xff]
    %v815 = vld [vmem:[#allocation14 + $0x298] sm:$0xff]
    %v816 = vld [vmem:[#allocation14 + $0x2a0] sm:$0xff]
    %v817 = vld [vmem:[#allocation14 + $0x2a8] sm:$0xff]
    %v818 = vld [vmem:[#allocation14 + $0x2b0] sm:$0xff]
    %v819 = vld [vmem:[#allocation14 + $0x2b8] sm:$0xff]
    %v820 = vld [vmem:[#allocation14 + $0x2c0] sm:$0xff]
    %v821 = vld [vmem:[#allocation14 + $0x2c8] sm:$0xff]
    %v822 = vld [vmem:[#allocation14 + $0x2d0] sm:$0xff]
    %v823 = vld [vmem:[#allocation14 + $0x2d8] sm:$0xff]
    %v824 = vld [vmem:[#allocation14 + $0x2e0] sm:$0xff]
    %v825 = vld [vmem:[#allocation14 + $0x2e8] sm:$0xff]
    %v826 = vld [vmem:[#allocation14 + $0x2f0] sm:$0xff]
    %v827 = vld [vmem:[#allocation14 + $0x2f8] sm:$0xff]
    %v828 = vld [vmem:[#allocation14 + $0x300] sm:$0xff]
    %v829 = vld [vmem:[#allocation14 + $0x308] sm:$0xff]
    %v830 = vld [vmem:[#allocation14 + $0x310] sm:$0xff]
    %v831 = vld [vmem:[#allocation14 + $0x318] sm:$0xff]
    %v832 = vld [vmem:[#allocation14 + $0x320] sm:$0xff]
    %v833 = vld [vmem:[#allocation14 + $0x328] sm:$0xff]
    %v834 = vld [vmem:[#allocation14 + $0x330] sm:$0xff]
    %v835 = vld [vmem:[#allocation14 + $0x338] sm:$0xff]
    %v836 = vld [vmem:[#allocation14 + $0x340] sm:$0xff]
    %v837 = vld [vmem:[#allocation14 + $0x348] sm:$0xff]
    %v838 = vld [vmem:[#allocation14 + $0x350] sm:$0xff]
    %v839 = vld [vmem:[#allocation14 + $0x358] sm:$0xff]
    %v840 = vld [vmem:[#allocation14 + $0x360] sm:$0xff]
    %v841 = vld [vmem:[#allocation14 + $0x368] sm:$0xff]
    %v842 = vld [vmem:[#allocation14 + $0x370] sm:$0xff]
    %v843 = vld [vmem:[#allocation14 + $0x378] sm:$0xff]
    %v844 = vld [vmem:[#allocation14 + $0x380] sm:$0xff]
    %v845 = vld [vmem:[#allocation14 + $0x388] sm:$0xff]
    %v846 = vld [vmem:[#allocation14 + $0x390] sm:$0xff]
    %v847 = vld [vmem:[#allocation14 + $0x398] sm:$0xff]
    %v848 = vld [vmem:[#allocation14 + $0x3a0] sm:$0xff]
    %v849 = vld [vmem:[#allocation14 + $0x3a8] sm:$0xff]
    %v850 = vld [vmem:[#allocation14 + $0x3b0] sm:$0xff]
    %v851 = vld [vmem:[#allocation14 + $0x3b8] sm:$0xff]
    %v852 = vld [vmem:[#allocation14 + $0x3c0] sm:$0xff]
    %v853 = vld [vmem:[#allocation14 + $0x3c8] sm:$0xff]
    %v854 = vld [vmem:[#allocation14 + $0x3d0] sm:$0xff]
    %v855 = vld [vmem:[#allocation14 + $0x3d8] sm:$0xff]
    %v856 = vld [vmem:[#allocation14 + $0x3e0] sm:$0xff]
    %v857 = vld [vmem:[#allocation14 + $0x3e8] sm:$0xff]
    %v858 = vld [vmem:[#allocation14 + $0x3f0] sm:$0xff]
    %v859 = vld [vmem:[#allocation14 + $0x3f8] sm:$0xff]
    %v860 = vld [vmem:[%s11] sm:$0x3]
    %v862 = vlaneseq
    %v863 = vshrl.u32 %v862, 7
    %v864 = vsub.s32 0, %v863
    %v865 = vrot.slane %v860, %v864
    %v866 = vlaneseq
    %v867 = vshrl.u32 %v866, 7
    %v868 = vsub.s32 1, %v867
    %v869 = vrot.slane %v860, %v868
    %872 = vmatprep.subr.mxu0 %v733
    %873 = vmatpush1.msra.mxu0 %v732
    %874 = vmatprep.subr.mxu0 %v735
    %875 = vmatpush1.msra.mxu0 %v734
    %876 = vmatprep.subr.mxu0 %v737
    %877 = vmatpush1.msra.mxu0 %v736
    %878 = vmatprep.subr.mxu0 %v739
    %879 = vmatpush1.msra.mxu0 %v738
    %880 = vmatprep.subr.mxu0 %v741
    %881 = vmatpush1.msra.mxu0 %v740
    %882 = vmatprep.subr.mxu0 %v743
    %883 = vmatpush1.msra.mxu0 %v742
    %884 = vmatprep.subr.mxu0 %v745
    %885 = vmatpush1.msra.mxu0 %v744
    %886 = vmatprep.subr.mxu0 %v747
    %887 = vmatpush1.msra.mxu0 %v746
    %888 = vmatprep.subr.mxu0 %v749
    %889 = vmatpush1.msra.mxu0 %v748
    %890 = vmatprep.subr.mxu0 %v751
    %891 = vmatpush1.msra.mxu0 %v750
    %892 = vmatprep.subr.mxu0 %v753
    %893 = vmatpush1.msra.mxu0 %v752
    %894 = vmatprep.subr.mxu0 %v755
    %895 = vmatpush1.msra.mxu0 %v754
    %896 = vmatprep.subr.mxu0 %v757
    %897 = vmatpush1.msra.mxu0 %v756
    %898 = vmatprep.subr.mxu0 %v759
    %899 = vmatpush1.msra.mxu0 %v758
    %900 = vmatprep.subr.mxu0 %v761
    %901 = vmatpush1.msra.mxu0 %v760
    %902 = vmatprep.subr.mxu0 %v763
    %903 = vmatpush1.msra.mxu0 %v762
    %904 = vmatprep.subr.mxu0 %v765
    %905 = vmatpush1.msra.mxu0 %v764
    %906 = vmatprep.subr.mxu0 %v767
    %907 = vmatpush1.msra.mxu0 %v766
    %908 = vmatprep.subr.mxu0 %v769
    %909 = vmatpush1.msra.mxu0 %v768
    %910 = vmatprep.subr.mxu0 %v771
    %911 = vmatpush1.msra.mxu0 %v770
    %912 = vmatprep.subr.mxu0 %v773
    %913 = vmatpush1.msra.mxu0 %v772
    %914 = vmatprep.subr.mxu0 %v775
    %915 = vmatpush1.msra.mxu0 %v774
    %916 = vmatprep.subr.mxu0 %v777
    %917 = vmatpush1.msra.mxu0 %v776
    %918 = vmatprep.subr.mxu0 %v779
    %919 = vmatpush1.msra.mxu0 %v778
    %920 = vmatprep.subr.mxu0 %v781
    %921 = vmatpush1.msra.mxu0 %v780
    %922 = vmatprep.subr.mxu0 %v783
    %923 = vmatpush1.msra.mxu0 %v782
    %924 = vmatprep.subr.mxu0 %v785
    %925 = vmatpush1.msra.mxu0 %v784
    %926 = vmatprep.subr.mxu0 %v787
    %927 = vmatpush1.msra.mxu0 %v786
    %928 = vmatprep.subr.mxu0 %v789
    %929 = vmatpush1.msra.mxu0 %v788
    %930 = vmatprep.subr.mxu0 %v791
    %931 = vmatpush1.msra.mxu0 %v790
    %932 = vmatprep.subr.mxu0 %v793
    %933 = vmatpush1.msra.mxu0 %v792
    %934 = vmatprep.subr.mxu0 %v795
    %935 = vmatpush1.msra.mxu0 %v794
    %936 = vmatprep.mubr.f32.mxu0 %v729
    %937 = vmatmul.mubr.f32.gmra.mrb[0].mxu0 %v728
    %v938 = vpop.f32.mrb[0].mxu0
    %v939 = vadd.f32 %v865, %v938
    %v940 = vpop.f32.mrb[0].mxu0
    %v941 = vadd.f32 %v869, %v940
    %942 = vdwg.mxu0
    %943 = vmatprep.subr.mxu0 %v797
    %944 = vmatpush1.msra.mxu0 %v796
    %945 = vmatprep.subr.mxu0 %v799
    %946 = vmatpush1.msra.mxu0 %v798
    %947 = vmatprep.subr.mxu0 %v801
    %948 = vmatpush1.msra.mxu0 %v800
    %949 = vmatprep.subr.mxu0 %v803
    %950 = vmatpush1.msra.mxu0 %v802
    %951 = vmatprep.subr.mxu0 %v805
    %952 = vmatpush1.msra.mxu0 %v804
    %953 = vmatprep.subr.mxu0 %v807
    %954 = vmatpush1.msra.mxu0 %v806
    %955 = vmatprep.subr.mxu0 %v809
    %956 = vmatpush1.msra.mxu0 %v808
    %957 = vmatprep.subr.mxu0 %v811
    %958 = vmatpush1.msra.mxu0 %v810
    %959 = vmatprep.subr.mxu0 %v813
    %960 = vmatpush1.msra.mxu0 %v812
    %961 = vmatprep.subr.mxu0 %v815
    %962 = vmatpush1.msra.mxu0 %v814
    %963 = vmatprep.subr.mxu0 %v817
    %964 = vmatpush1.msra.mxu0 %v816
    %965 = vmatprep.subr.mxu0 %v819
    %966 = vmatpush1.msra.mxu0 %v818
    %967 = vmatprep.subr.mxu0 %v821
    %968 = vmatpush1.msra.mxu0 %v820
    %969 = vmatprep.subr.mxu0 %v823
    %970 = vmatpush1.msra.mxu0 %v822
    %971 = vmatprep.subr.mxu0 %v825
    %972 = vmatpush1.msra.mxu0 %v824
    %973 = vmatprep.subr.mxu0 %v827
    %974 = vmatpush1.msra.mxu0 %v826
    %975 = vmatprep.subr.mxu0 %v829
    %976 = vmatpush1.msra.mxu0 %v828
    %977 = vmatprep.subr.mxu0 %v831
    %978 = vmatpush1.msra.mxu0 %v830
    %979 = vmatprep.subr.mxu0 %v833
    %980 = vmatpush1.msra.mxu0 %v832
    %981 = vmatprep.subr.mxu0 %v835
    %982 = vmatpush1.msra.mxu0 %v834
    %983 = vmatprep.subr.mxu0 %v837
    %984 = vmatpush1.msra.mxu0 %v836
    %985 = vmatprep.subr.mxu0 %v839
    %986 = vmatpush1.msra.mxu0 %v838
    %987 = vmatprep.subr.mxu0 %v841
    %988 = vmatpush1.msra.mxu0 %v840
    %989 = vmatprep.subr.mxu0 %v843
    %990 = vmatpush1.msra.mxu0 %v842
    %991 = vmatprep.subr.mxu0 %v845
    %992 = vmatpush1.msra.mxu0 %v844
    %993 = vmatprep.subr.mxu0 %v847
    %994 = vmatpush1.msra.mxu0 %v846
    %995 = vmatprep.subr.mxu0 %v849
    %996 = vmatpush1.msra.mxu0 %v848
    %997 = vmatprep.subr.mxu0 %v851
    %998 = vmatpush1.msra.mxu0 %v850
    %999 = vmatprep.subr.mxu0 %v853
    %1000 = vmatpush1.msra.mxu0 %v852
    %1001 = vmatprep.subr.mxu0 %v855
    %1002 = vmatpush1.msra.mxu0 %v854
    %1003 = vmatprep.subr.mxu0 %v857
    %1004 = vmatpush1.msra.mxu0 %v856
    %1005 = vmatprep.subr.mxu0 %v859
    %1006 = vmatpush1.msra.mxu0 %v858
    %1007 = vmatprep.mubr.f32.mxu0 %v731
    %1008 = vmatmul.mubr.f32.gmra.mrb[0].mxu0 %v730
    %v1009 = vpop.f32.mrb[0].mxu0
    %v1010 = vadd.f32 %v939, %v1009
    %v1011 = vpop.f32.mrb[0].mxu0
    %v1012 = vadd.f32 %v941, %v1011
    %1013 = vdwg.mxu0
    %v1014 = vsub.f32 0.0, %v1010
    %v1015 = vsub.f32 0.0, %v1012
    %v1016 = vmul.f32 %v1014, 1.442695
    %v1017 = vpow.pop %v1016
    %v1018 = vmul.f32 %v1015, 1.442695
    %v1019 = vpow.pop %v1018
    %v1020 = vadd.f32 %v1017, 1.0
    %v1021 = vadd.f32 %v1019, 1.0
    %v1022 = vrcp.pop %v1020
    %v1023 = vmul.f32 1.0, %v1022
    %v1024 = vrcp.pop %v1021
    %v1025 = vmul.f32 1.0, %v1024
    %v1026 = vadd.f32 %v410, 1e-08
    %v1027 = vlog2.pop %v1026
    %v1028 = vmul.f32 %v1027, 0.6931472
    %v1029 = vadd.f32 %v1028, 2.7725887
    %v1030 = vmul.f32 %v410, %v1029
    %1031 = vadd.xlane.f32.xlu0 %v1030
    %v1032 = vpop.xlane.xlu0 %1031
    %1033 = vst [vmem:[#allocation15] sm:$0xff] %v1023
    %1034 = vst [vmem:[#allocation15 + $0x8] sm:$0xff] %v1025
    %1035 = vst [vmem:[#allocation16] sm:$0xff] %v410
    %vm1036 = vcmask 7168
    %1037 = vst.msk [vmem:[%s14] sm:$0xff] %vm1036, %v1032
    // Predicated region
    $region78: #{tpu_custom_call.1} parent=1 // pred_check
      _
    $region79: #{tpu_custom_call.1} parent=1 // pred_check_branch
      %1039 = sbr.rel (0) target = $region81
    $region80: #{tpu_custom_call.1} parent=1 // pred_region
      %s1041 = ssub.s32 256, 256
      %1042 = vsyncadd [#allocation5], %s1041
      %s1044 = sshll.u32 [#allocation15], 4
      %s1045 = int_to_ptr.vmem [resolvable:$true] %s1044
      %1047 = dma.vmem_to_hbm [thread:$0]  %s1045, 256, %s12, [#allocation5]
    $region81: #{tpu_custom_call.1} parent=1 // pred_fallthru
      _
    // Predicated region
    $region82: #{tpu_custom_call.1} parent=1 // pred_check
      _
    $region83: #{tpu_custom_call.1} parent=1 // pred_check_branch
      %1049 = sbr.rel (0) target = $region85
    $region84: #{tpu_custom_call.1} parent=1 // pred_region
      %s1051 = ssub.s32 128, 128
      %1052 = vsyncadd [#allocation17], %s1051
      %s1054 = sshll.u32 [#allocation16], 4
      %s1055 = int_to_ptr.vmem [resolvable:$true] %s1054
      %1057 = dma.vmem_to_hbm [thread:$0]  %s1055, 128, %s13, [#allocation17]
    $region85: #{tpu_custom_call.1} parent=1 // pred_fallthru
      _
    // Predicated region
    $region86: #{tpu_custom_call.1} parent=1 // pred_check
      _
    $region87: #{tpu_custom_call.1} parent=1 // pred_check_branch
      %1059 = sbr.rel (0) target = $region89
    $region88: #{tpu_custom_call.1} parent=1 // pred_region
      _
    $region89: #{tpu_custom_call.1} parent=1 // pred_fallthru
      _
    // Predicated region
    $region90: #{tpu_custom_call.1} parent=1 // pred_check
      _
    $region91: #{tpu_custom_call.1} parent=1 // pred_check_branch
      %1061 = sbr.rel (0) target = $region93
    $region92: #{tpu_custom_call.1} parent=1 // pred_region
      %1062 = dma.done [#allocation5], 256
    $region93: #{tpu_custom_call.1} parent=1 // pred_fallthru
      _
    // Predicated region
    $region94: #{tpu_custom_call.1} parent=1 // pred_check
      _
    $region95: #{tpu_custom_call.1} parent=1 // pred_check_branch
      %1064 = sbr.rel (0) target = $region97
    $region96: #{tpu_custom_call.1} parent=1 // pred_region
      %1065 = dma.done [#allocation17], 128
    $region97: #{tpu_custom_call.1} parent=1 // pred_fallthru
      _
    // Predicated region
    $region98: #{tpu_custom_call.1} parent=1 // pred_check
      _
    $region99: #{tpu_custom_call.1} parent=1 // pred_check_branch
      %1067 = sbr.rel (0) target = $region101
    $region100: #{tpu_custom_call.1} parent=1 // pred_region
      _
    $region101: #{tpu_custom_call.1} parent=1 // pred_fallthru
      _
    %1068 = vsyncpa [#allocation4], 1
    %1069 = vsyncpa [#allocation7], 1
    %1070 = vsyncpa [#allocation10], 1
    %1071 = vsyncpa [#allocation13], 1
    %1072 = vsyncpa [#allocation5], 1
    %1073 = vsyncpa [#allocation17], 1

</llo_original>
